<compile_context>
chip_gen: v5e
topology: v5e:2x2
jax: 0.10.0
libtpu: 0.0.40
codegen_flags: <defaults>
</compile_context>

<pallas_src>
import functools

import jax
import jax.numpy as jnp
from jax import lax
from jax.experimental import pallas as pl
from jax.experimental.pallas import tpu as pltpu


def _round_up(x, m):
    return ((x + m - 1) // m) * m


def _pad_to(a, shape):
    pads = [(0, t - s) for s, t in zip(a.shape, shape)]
    if all(p == (0, 0) for p in pads):
        return a
    return jnp.pad(a, pads)


def _linear_kernel(x_ref, w_ref, b_ref, o_ref, acc_ref, *, compute_dtype):
    # grid = (batch_tiles, n_tiles, k_tiles); K is the innermost reduction axis.
    @pl.when(pl.program_id(2) == 0)
    def _init():
        acc_ref[...] = jnp.zeros_like(acc_ref)

    xv = x_ref[...]          # [bm, bk]
    wv = w_ref[...]          # [bn, bk]  (PyTorch layout, no transpose needed)
    if compute_dtype is not None:
        xv = xv.astype(compute_dtype)
        wv = wv.astype(compute_dtype)

    # Contract x's dim 1 with w's dim 1 -> [bm, bn]; f32 accumulation on MXU.
    acc_ref[...] += lax.dot_general(
        xv, wv,
        dimension_numbers=(((1,), (1,)), ((), ())),
        preferred_element_type=jnp.float32)

    @pl.when(pl.program_id(2) == pl.num_programs(2) - 1)
    def _finalize():
        # Bias-add epilogue in f32; cast only at the final store.
        o_ref[...] = (acc_ref[...] + b_ref[...].astype(jnp.float32)).astype(o_ref.dtype)


@functools.partial(jax.jit, static_argnames=("compute_dtype",))
def attr_agg2_forward(x, weight, bias, *, compute_dtype=None):
    """x: [B, in_dim]; weight: [hidden_dim, in_dim] (PyTorch layout); bias: [hidden_dim]."""
    B, K = x.shape
    N, Kw = weight.shape
    assert K == Kw

    # ---- tile selection (lane-dense, VMEM-safe on v5e/v6e/v7x) ----
    bm = min(_round_up(B, 8), 512)       # batch tile (sublane-aligned)
    bn = min(_round_up(N, 128), 512)     # output-feature tile (lane-aligned)
    bk = min(_round_up(K, 128), 512)     # reduction tile (lane-aligned)

    B_pad = _round_up(B, bm)
    N_pad = _round_up(N, bn)
    K_pad = _round_up(K, bk)

    # Zero-padding K is numerically exact; padded rows/cols are sliced away.
    x_p = _pad_to(x, (B_pad, K_pad))
    w_p = _pad_to(weight, (N_pad, K_pad))
    b_p = _pad_to(bias.reshape(1, N), (1, N_pad))

    grid = (B_pad // bm, N_pad // bn, K_pad // bk)

    elt = jnp.dtype(x.dtype).itemsize
    cost = pl.CostEstimate(
        flops=2 * B * K * N,
        transcendentals=0,
        bytes_accessed=(B * K + N * K + N + B * N) * elt)

    out_pad = pl.pallas_call(
        functools.partial(_linear_kernel, compute_dtype=compute_dtype),
        out_shape=jax.ShapeDtypeStruct((B_pad, N_pad), x.dtype),
        grid_spec=pltpu.PrefetchScalarGridSpec(
            num_scalar_prefetch=0,
            grid=grid,
            in_specs=[
                pl.BlockSpec((bm, bk), lambda i, j, k: (i, k)),   # x
                pl.BlockSpec((bn, bk), lambda i, j, k: (j, k)),   # weight (untransposed)
                pl.BlockSpec((1, bn), lambda i, j, k: (0, j)),    # bias
            ],
            out_specs=pl.BlockSpec((bm, bn), lambda i, j, k: (i, j)),
            scratch_shapes=[pltpu.VMEM((bm, bn), jnp.float32)],
        ),
        compiler_params=pltpu.CompilerParams(
            dimension_semantics=("parallel", "parallel", "arbitrary")),
        cost_estimate=cost,
    )(x_p, w_p, b_p)

    return out_pad[:B, :N]


if __name__ == "__main__":
    # Shapes implied by the module: x [batch, input_dim] -> y [batch, hidden_dim]
    batch, input_dim, hidden_dim = 8, 16, 32

    key = jax.random.PRNGKey(0)
    kx, kw, kb = jax.random.split(key, 3)

    x = jax.random.normal(kx, (batch, input_dim), dtype=jnp.float32)
    # Deterministic parameter init (mimicking nn.Linear's uniform init bounds).
    bound = 1.0 / (input_dim ** 0.5)
    weight = jax.random.uniform(kw, (hidden_dim, input_dim),
                                minval=-bound, maxval=bound, dtype=jnp.float32)
    bias = jax.random.uniform(kb, (hidden_dim,),
                              minval=-bound, maxval=bound, dtype=jnp.float32)

    # f32 compute for a tight numerical check; pass compute_dtype=jnp.bfloat16
    # on v6e/v7x for MXU-native throughput at real sizes.
    y = attr_agg2_forward(x, weight, bias)
    jax.block_until_ready(y)

    y_ref = x @ weight.T + bias
    assert y.shape == y_ref.shape
    assert jnp.allclose(y, y_ref, atol=1e-5), "mismatch vs reference"

    print("KERNEL_OK")
</pallas_src>

<mosaic_0001>
module attributes {stable_mosaic.version = 11 : i64} {
  func.func @_linear_kernel(%arg0: i32, %arg1: i32, %arg2: i32, %arg3: memref<8x128xf32, #tpu.memory_space<vmem>>, %arg4: memref<128x128xf32, #tpu.memory_space<vmem>>, %arg5: memref<1x128xf32, #tpu.memory_space<vmem>>, %arg6: memref<8x128xf32, #tpu.memory_space<vmem>>, %arg7: memref<8x128xf32, #tpu.memory_space<vmem>>) attributes {dimension_semantics = [#tpu.dimension_semantics<parallel>, #tpu.dimension_semantics<parallel>, #tpu.dimension_semantics<arbitrary>], iteration_bounds = array<i64: 1, 1, 1>, scalar_prefetch = 0 : i64, scratch_operands = 1 : i64, tpu.core_type = #tpu.core_type<tc>, window_params = [{transform_indices = @transform_0, window_bounds = array<i64: 8, 128>}, {transform_indices = @transform_1, window_bounds = array<i64: 128, 128>}, {transform_indices = @transform_2, window_bounds = array<i64: 1, 128>}, {transform_indices = @transform_3, window_bounds = array<i64: 8, 128>}]} {
    %c0_i32 = arith.constant 0 : i32
    %0 = arith.cmpi eq, %arg2, %c0_i32 : i32
    %1 = arith.extui %0 : i1 to i32
    %c0_i32_0 = arith.constant 0 : i32
    %2 = arith.cmpi ne, %1, %c0_i32_0 : i32
    scf.if %2 {
      %cst_10 = arith.constant 0.000000e+00 : f32
      %12 = vector.broadcast %cst_10 : f32 to vector<8x128xf32>
      %c0_11 = arith.constant 0 : index
      %c0_12 = arith.constant 0 : index
      %13 = vector.load %arg7[%c0_11, %c0_12] : memref<8x128xf32, #tpu.memory_space<vmem>>, vector<8x128xf32>
      tpu.vector_store %arg7[%c0_11, %c0_12], %12 {strides = array<i32>} : memref<8x128xf32, #tpu.memory_space<vmem>>, vector<8x128xf32>,
    } else {
    }
    %c0 = arith.constant 0 : index
    %c0_1 = arith.constant 0 : index
    %3 = vector.load %arg3[%c0, %c0_1] : memref<8x128xf32, #tpu.memory_space<vmem>>, vector<8x128xf32>
    %c0_2 = arith.constant 0 : index
    %c0_3 = arith.constant 0 : index
    %4 = vector.load %arg4[%c0_2, %c0_3] : memref<128x128xf32, #tpu.memory_space<vmem>>, vector<128x128xf32>
    %c0_4 = arith.constant 0 : index
    %c0_5 = arith.constant 0 : index
    %5 = vector.load %arg7[%c0_4, %c0_5] : memref<8x128xf32, #tpu.memory_space<vmem>>, vector<8x128xf32>
    %cst = arith.constant dense<0.000000e+00> : vector<8x128xf32>
    %6 = tpu.matmul %3, %4, %cst {dimension_numbers = #tpu.dot_dimension_numbers<[1], [1], [0], [0], [0, 0, 1, 0], [], []>} : vector<8x128xf32>, vector<128x128xf32>, vector<8x128xf32> -> vector<8x128xf32>
    %7 = arith.addf %5, %6 : vector<8x128xf32>
    %c0_6 = arith.constant 0 : index
    %c0_7 = arith.constant 0 : index
    %8 = vector.load %arg7[%c0_6, %c0_7] : memref<8x128xf32, #tpu.memory_space<vmem>>, vector<8x128xf32>
    tpu.vector_store %arg7[%c0_6, %c0_7], %7 {strides = array<i32>} : memref<8x128xf32, #tpu.memory_space<vmem>>, vector<8x128xf32>,
    %c0_i32_8 = arith.constant 0 : i32
    %9 = arith.cmpi eq, %arg2, %c0_i32_8 : i32
    %10 = arith.extui %9 : i1 to i32
    %c0_i32_9 = arith.constant 0 : i32
    %11 = arith.cmpi ne, %10, %c0_i32_9 : i32
    scf.if %11 {
      %c0_10 = arith.constant 0 : index
      %c0_11 = arith.constant 0 : index
      %12 = vector.load %arg7[%c0_10, %c0_11] : memref<8x128xf32, #tpu.memory_space<vmem>>, vector<8x128xf32>
      %c0_12 = arith.constant 0 : index
      %c0_13 = arith.constant 0 : index
      %13 = vector.load %arg5[%c0_12, %c0_13] : memref<1x128xf32, #tpu.memory_space<vmem>>, vector<1x128xf32>
      %14 = vector.broadcast %13 : vector<1x128xf32> to vector<8x128xf32>
      %15 = arith.addf %12, %14 : vector<8x128xf32>
      %c0_14 = arith.constant 0 : index
      %c0_15 = arith.constant 0 : index
      %16 = vector.load %arg6[%c0_14, %c0_15] : memref<8x128xf32, #tpu.memory_space<vmem>>, vector<8x128xf32>
      tpu.vector_store %arg6[%c0_14, %c0_15], %15 {strides = array<i32>} : memref<8x128xf32, #tpu.memory_space<vmem>>, vector<8x128xf32>,
    } else {
    }
    return
  }
  func.func @transform_0(%arg0: i32, %arg1: i32, %arg2: i32) -> (i32, i32) {
    %c0_i32 = arith.constant 0 : i32
    return %arg0, %arg2 : i32, i32
  }
  func.func @transform_1(%arg0: i32, %arg1: i32, %arg2: i32) -> (i32, i32) {
    %c0_i32 = arith.constant 0 : i32
    return %arg1, %arg2 : i32, i32
  }
  func.func @transform_2(%arg0: i32, %arg1: i32, %arg2: i32) -> (i32, i32) {
    %c0_i32 = arith.constant 0 : i32
    %c0_i32_0 = arith.constant 0 : i32
    return %c0_i32, %arg1 : i32, i32
  }
  func.func @transform_3(%arg0: i32, %arg1: i32, %arg2: i32) -> (i32, i32) {
    %c0_i32 = arith.constant 0 : i32
    return %arg0, %arg1 : i32, i32
  }
}

</mosaic_0001>

<llo_original>
// kernel: attr_agg2_forward.1
$region0: #{attr_agg2_forward.1}
  #allocation0 [shape = 'u32[]', space=smem, size = 0x4, offset = 0x4, fixed_abs, tag = 'smem constant byte address 0x4 - core index']
  #allocation1 [shape = 'u32[72,128]{1,0:T(1,128)}', space=vmem, size = 0x9000, scoped, tag = 'internal scratch']
  #allocation2 [shape = 'f32[8,128]{1,0:T(8,128)}', space=vmem, size = 0x1000, scoped, tag = 'scratch operand']
  %s0 = inlined_call_operand.vmem [shape: f32[8,128], index: 0, kind: input, shape index: {}]
  %s1 = inlined_call_operand.vmem [shape: f32[128,128], index: 1, kind: input, shape index: {}]
  %s2 = inlined_call_operand.vmem [shape: f32[1,128], index: 2, kind: input, shape index: {}]
  %s3 = inlined_call_operand.hbm [shape: f32[8,128], index: 3, kind: output, shape index: {}]
  %s4 = sld [smem:[#allocation0]]
  $region30: #{attr_agg2_forward.1} parent=0
    _
  %s6 = ssub.s32 1, %s4
  %s7 = scalar_select 0, %s6, %s4
  $region1: #{attr_agg2_forward.1} parent=0
    #allocation3 [shape = 'u8[4096]{0}', space=vmem, size = 0x1000, scoped, tag = 'output window, operand 0, single buffered']
    #allocation4 [shape = 's32[1]{0}', space=sflag, size = 0x4, scoped, tag = 'scoped memory for attr_agg2_forward.1']
    %8 = vsyncpa [#allocation4], 0
    // Predicated region
    $region2: #{attr_agg2_forward.1} parent=1 // pred_check
      _
    $region3: #{attr_agg2_forward.1} parent=1 // pred_check_branch
      %10 = sbr.rel (0) target = $region5
    $region4: #{attr_agg2_forward.1} parent=1 // pred_region
      _
    $region5: #{attr_agg2_forward.1} parent=1 // pred_fallthru
      _
    // Predicated region
    $region6: #{attr_agg2_forward.1} parent=1 // pred_check
      _
    $region7: #{attr_agg2_forward.1} parent=1 // pred_check_branch
      %12 = sbr.rel (0) target = $region9
    $region8: #{attr_agg2_forward.1} parent=1 // pred_region
      _
    $region9: #{attr_agg2_forward.1} parent=1 // pred_fallthru
      _
    // Predicated region
    $region10: #{attr_agg2_forward.1} parent=1 // pred_check
      _
    $region11: #{attr_agg2_forward.1} parent=1 // pred_check_branch
      %14 = sbr.rel (0) target = $region13
    $region12: #{attr_agg2_forward.1} parent=1 // pred_region
      _
    $region13: #{attr_agg2_forward.1} parent=1 // pred_fallthru
      _
    %p15 = scmp.eq.s32.totalorder 0, 0
    // Predicated region
    $region14: #{attr_agg2_forward.1} parent=1 // pred_check
      %p16 = pneg %p15
    $region15: #{attr_agg2_forward.1} parent=1 // pred_check_branch
      %18 = sbr.rel (%p16) target = $region17
    $region16: #{attr_agg2_forward.1} parent=1 // pred_region
      %19 = vst [vmem:[#allocation2] sm:$0xff] 0.0
    $region17: #{attr_agg2_forward.1} parent=1 // pred_fallthru
      _
    %v20 = vld [vmem:[%s0] sm:$0xff]
    %v21 = vld [vmem:[%s1] sm:$0xff]
    %v22 = vld [vmem:[%s1 + $0x8] sm:$0xff]
    %v23 = vld [vmem:[%s1 + $0x10] sm:$0xff]
    %v24 = vld [vmem:[%s1 + $0x18] sm:$0xff]
    %v25 = vld [vmem:[%s1 + $0x20] sm:$0xff]
    %v26 = vld [vmem:[%s1 + $0x28] sm:$0xff]
    %v27 = vld [vmem:[%s1 + $0x30] sm:$0xff]
    %v28 = vld [vmem:[%s1 + $0x38] sm:$0xff]
    %v29 = vld [vmem:[%s1 + $0x40] sm:$0xff]
    %v30 = vld [vmem:[%s1 + $0x48] sm:$0xff]
    %v31 = vld [vmem:[%s1 + $0x50] sm:$0xff]
    %v32 = vld [vmem:[%s1 + $0x58] sm:$0xff]
    %v33 = vld [vmem:[%s1 + $0x60] sm:$0xff]
    %v34 = vld [vmem:[%s1 + $0x68] sm:$0xff]
    %v35 = vld [vmem:[%s1 + $0x70] sm:$0xff]
    %v36 = vld [vmem:[%s1 + $0x78] sm:$0xff]
    %v37 = vld [vmem:[#allocation2] sm:$0xff]
    %38 = vmatpush.xpose.msra.mxu0 %v36
    %39 = vmatpush.xpose.msra.mxu0 %v35
    %40 = vmatpush.xpose.msra.mxu0 %v34
    %41 = vmatpush.xpose.msra.mxu0 %v33
    %42 = vmatpush.xpose.msra.mxu0 %v32
    %43 = vmatpush.xpose.msra.mxu0 %v31
    %44 = vmatpush.xpose.msra.mxu0 %v30
    %45 = vmatpush.xpose.msra.mxu0 %v29
    %46 = vmatpush.xpose.msra.mxu0 %v28
    %47 = vmatpush.xpose.msra.mxu0 %v27
    %48 = vmatpush.xpose.msra.mxu0 %v26
    %49 = vmatpush.xpose.msra.mxu0 %v25
    %50 = vmatpush.xpose.msra.mxu0 %v24
    %51 = vmatpush.xpose.msra.mxu0 %v23
    %52 = vmatpush.xpose.msra.mxu0 %v22
    %53 = vmatpush.xpose.msra.mxu0 %v21
    %54 = vmatmul.f32.gmra.mxu0 %v20
    %v55 = vpop.f32.mrf.mxu0
    %v56 = vadd.f32 0.0, %v55
    %57 = vdwg.mxu0
    %v58 = vadd.f32 %v37, %v56
    %59 = vst [vmem:[#allocation2] sm:$0xff] %v58
    // Predicated region
    $region18: #{attr_agg2_forward.1} parent=1 // pred_check
      %p60 = pneg %p15
    $region19: #{attr_agg2_forward.1} parent=1 // pred_check_branch
      %62 = sbr.rel (%p60) target = $region21
    $region20: #{attr_agg2_forward.1} parent=1 // pred_region
      %v63 = vld [vmem:[#allocation2] sm:$0xff]
      %v64 = vld [vmem:[%s2] sm:$0x1]
      %v66 = vperm.slane %v64, 0
      %v68 = vadd.f32 %v63, %v66
      %69 = vst [vmem:[#allocation3] sm:$0xff] %v68
    $region21: #{attr_agg2_forward.1} parent=1 // pred_fallthru
      _
    // Predicated region
    $region22: #{attr_agg2_forward.1} parent=1 // pred_check
      _
    $region23: #{attr_agg2_forward.1} parent=1 // pred_check_branch
      %71 = sbr.rel (0) target = $region25
    $region24: #{attr_agg2_forward.1} parent=1 // pred_region
      %73 = vsyncadd [#allocation4], 0
      %s75 = sshll.u32 [#allocation3], 4
      %s76 = int_to_ptr.vmem [resolvable:$true] %s75
      %s77 = sshll.u32 %s3, 4
      %s78 = int_to_ptr.hbm [resolvable:$true] %s77
      %80 = dma.vmem_to_hbm [thread:$0]  %s76, 128, %s78, [#allocation4]
    $region25: #{attr_agg2_forward.1} parent=1 // pred_fallthru
      _
    // Predicated region
    $region26: #{attr_agg2_forward.1} parent=1 // pred_check
      _
    $region27: #{attr_agg2_forward.1} parent=1 // pred_check_branch
      %82 = sbr.rel (0) target = $region29
    $region28: #{attr_agg2_forward.1} parent=1 // pred_region
      %84 = dma.done [#allocation4], 128
    $region29: #{attr_agg2_forward.1} parent=1 // pred_fallthru
      _
    %85 = vsyncpa [#allocation4], 1

</llo_original>
